<compile_context>
chip_gen: v6e
topology: v6e:2x2x1
jax: 0.10.0
libtpu: 0.0.40
codegen_flags: <defaults>
</compile_context>

<pallas_src>
import functools

import jax
import jax.numpy as jnp
from jax import lax
from jax.experimental import pallas as pl
from jax.experimental.pallas import tpu as pltpu


def _round_up(x, m):
    return ((x + m - 1) // m) * m


# ---------------------------------------------------------------------------
# Kernel: fused gather (one-hot) + weight + reduce + (optional) normalize
# ---------------------------------------------------------------------------
def _nll_kernel(*refs, weighted, single_step):
    """Ref layout:
       weighted   : pred(TN,C), tgt(TN,1), w(1,C), out(1,1 SMEM)[, num_acc, den_acc]
       unweighted : pred(TN,C), tgt(TN,1),          out(1,1 SMEM)[, num_acc]
    """
    if weighted:
        pred_ref, tgt_ref, w_ref = refs[:3]
        rest = refs[3:]
    else:
        pred_ref, tgt_ref = refs[:2]
        rest = refs[2:]
    out_ref = rest[0]
    scratch = rest[1:]

    pred = pred_ref[...].astype(jnp.float32)                  # (TN, C)
    tgt = tgt_ref[...]                                        # (TN, 1) int32
    cls = lax.broadcasted_iota(jnp.int32, pred.shape, 1)      # class ids along lanes
    onehot = (cls == tgt).astype(jnp.float32)                 # padded rows (tgt=-1) -> all-zero
    if weighted:
        wsel = onehot * w_ref[...].astype(jnp.float32)        # weight[t_i] at selected lane
    else:
        wsel = onehot

    # Sublane-direction partial reduction: mostly VPU adds, lanes stay intact.
    num_part = jnp.sum(pred * wsel, axis=0, keepdims=True)    # (1, C)
    if weighted:
        den_part = jnp.sum(wsel, axis=0, keepdims=True)       # (1, C)

    if single_step:
        # Whole problem in one tile: no accumulator, no phases.
        num = jnp.sum(num_part)
        if weighted:
            out_ref[0, 0] = -(num / jnp.sum(den_part))
        else:
            out_ref[0, 0] = -num
        return

    i = pl.program_id(0)
    num_acc = scratch[0]
    den_acc = scratch[1] if weighted else None

    @pl.when(i == 0)
    def _init():
        num_acc[...] = jnp.zeros_like(num_acc)
        if weighted:
            den_acc[...] = jnp.zeros_like(den_acc)

    num_acc[...] += num_part
    if weighted:
        den_acc[...] += den_part

    @pl.when(i == pl.num_programs(0) - 1)
    def _finalize():
        num = jnp.sum(num_acc[...])
        if weighted:
            out_ref[0, 0] = -(num / jnp.sum(den_acc[...]))
        else:
            out_ref[0, 0] = -num


# ---------------------------------------------------------------------------
# Wrapper
# ---------------------------------------------------------------------------
def unmasked_weighted_nll_loss(pred, target, weight=None, *, block_rows=8192):
    """Pallas TPU implementation of UnMaskedWeightedNLLLoss.forward."""
    pred = jnp.asarray(pred)
    if pred.dtype not in (jnp.bfloat16, jnp.float32):
        pred = pred.astype(jnp.float32)
    target = jnp.asarray(target, jnp.int32)
    n, c = pred.shape
    weighted = weight is not None

    # Row tile: multiple of 8 (sublane rule).  Default 8192 rows keeps
    # pred+target tiles ~16 MiB double-buffered (fits v7x's 32 MiB scoped VMEM).
    block_rows = max(8, _round_up(int(block_rows), 8))
    tn = min(_round_up(n, 8), block_rows)
    n_pad = _round_up(n, tn)
    if n_pad != n:
        # Padded rows get target = -1 -> all-zero one-hot -> contribute nothing.
        pred = jnp.pad(pred, ((0, n_pad - n), (0, 0)))
        target = jnp.pad(target, (0, n_pad - n), constant_values=-1)
    tgt2d = target.reshape(n_pad, 1)

    steps = n_pad // tn
    single_step = steps == 1

    in_specs = [
        pl.BlockSpec((tn, c), lambda i: (i, 0)),    # pred row-tile
        pl.BlockSpec((tn, 1), lambda i: (i, 0)),    # target row-tile
    ]
    args = [pred, tgt2d]
    if weighted:
        w2d = jnp.asarray(weight, jnp.float32).reshape(1, c)
        in_specs.append(pl.BlockSpec((1, c), lambda i: (0, 0)))   # resident weights
        args.append(w2d)

    scratch_shapes = []
    if not single_step:
        scratch_shapes.append(pltpu.VMEM((1, c), jnp.float32))    # numerator partials
        if weighted:
            scratch_shapes.append(pltpu.VMEM((1, c), jnp.float32))  # denominator partials

    out = pl.pallas_call(
        functools.partial(_nll_kernel, weighted=weighted, single_step=single_step),
        out_shape=jax.ShapeDtypeStruct((1, 1), jnp.float32),
        grid=(steps,),
        in_specs=in_specs,
        out_specs=pl.BlockSpec(memory_space=pltpu.MemorySpace.SMEM),
        scratch_shapes=scratch_shapes,
        compiler_params=pltpu.CompilerParams(
            dimension_semantics=("arbitrary",)),                   # reduction axis
    )(*args)
    return out[0, 0]


# ---------------------------------------------------------------------------
# Pure-JAX reference (mirrors nn.NLLLoss(weight, reduction='sum') semantics)
# ---------------------------------------------------------------------------
def _ref_loss(pred, target, weight=None):
    pred = jnp.asarray(pred, jnp.float32)
    picked = jnp.take_along_axis(pred, target[:, None], axis=1)[:, 0]
    if weight is None:
        return -jnp.sum(picked)
    wt = jnp.asarray(weight, jnp.float32)[target]
    return -jnp.sum(wt * picked) / jnp.sum(wt)


if __name__ == "__main__":
    key = jax.random.PRNGKey(0)
    k_logits, k_tgt, k_w, k_logits2, k_tgt2 = jax.random.split(key, 5)

    # Small shapes implied by the module: pred -> (batch*seq_len, n_classes).
    batch, seq_len, n_classes = 2, 8, 7
    n = batch * seq_len

    logits = jax.random.normal(k_logits, (n, n_classes), dtype=jnp.float32)
    pred = jax.nn.log_softmax(logits, axis=-1)
    target = jax.random.randint(k_tgt, (n,), 0, n_classes, dtype=jnp.int32)
    weight = jax.random.uniform(k_w, (n_classes,), dtype=jnp.float32,
                                minval=0.5, maxval=1.5)

    # Case 1: weight is None -> plain summed NLL (single-step grid, no scratch).
    loss_u = jax.block_until_ready(unmasked_weighted_nll_loss(pred, target, None))
    ref_u = _ref_loss(pred, target, None)
    assert jnp.allclose(loss_u, ref_u, rtol=1e-5, atol=1e-5), (loss_u, ref_u)

    # Case 2: per-class weights -> weighted sum / sum(weight[target]).
    loss_w = jax.block_until_ready(unmasked_weighted_nll_loss(pred, target, weight))
    ref_w = _ref_loss(pred, target, weight)
    assert jnp.allclose(loss_w, ref_w, rtol=1e-5, atol=1e-5), (loss_w, ref_w)

    # Case 3: larger N, not a multiple of the row tile -> exercises the
    # multi-step grid + VMEM accumulation + padded-row path.
    n2 = 1000
    logits2 = jax.random.normal(k_logits2, (n2, n_classes), dtype=jnp.float32)
    pred2 = jax.nn.log_softmax(logits2, axis=-1)
    target2 = jax.random.randint(k_tgt2, (n2,), 0, n_classes, dtype=jnp.int32)
    loss_big = jax.block_until_ready(
        unmasked_weighted_nll_loss(pred2, target2, weight, block_rows=256))
    ref_big = _ref_loss(pred2, target2, weight)
    assert jnp.allclose(loss_big, ref_big, rtol=1e-5, atol=1e-5), (loss_big, ref_big)

    # Case 4: bf16 log-probs (upcast + accumulate in f32 inside the kernel).
    loss_bf = jax.block_until_ready(
        unmasked_weighted_nll_loss(pred.astype(jnp.bfloat16), target, weight))
    assert jnp.allclose(loss_bf, ref_w, rtol=2e-2, atol=2e-2), (loss_bf, ref_w)

    assert bool(jnp.isfinite(loss_u)) and bool(jnp.isfinite(loss_w))
    print("KERNEL_OK")
</pallas_src>

<mosaic_0001>
module attributes {stable_mosaic.version = 11 : i64} {
  func.func @_nll_kernel(%arg0: i32, %arg1: memref<16x7xf32, #tpu.memory_space<vmem>>, %arg2: memref<16x1xi32, #tpu.memory_space<vmem>>, %arg3: memref<1x1xf32, #tpu.memory_space<smem>>) attributes {dimension_semantics = [#tpu.dimension_semantics<arbitrary>], iteration_bounds = array<i64: 1>, scalar_prefetch = 0 : i64, scratch_operands = 0 : i64, tpu.core_type = #tpu.core_type<tc>, window_params = [{transform_indices = @transform_0, window_bounds = array<i64: 16, 7>}, {transform_indices = @transform_1, window_bounds = array<i64: 16, 1>}, {transform_indices = @transform_2, window_bounds = array<i64: 1, 1>}]} {
    %c0 = arith.constant 0 : index
    %c0_0 = arith.constant 0 : index
    %0 = vector.load %arg1[%c0, %c0_0] : memref<16x7xf32, #tpu.memory_space<vmem>>, vector<16x7xf32>
    %c0_1 = arith.constant 0 : index
    %c0_2 = arith.constant 0 : index
    %1 = vector.load %arg2[%c0_1, %c0_2] : memref<16x1xi32, #tpu.memory_space<vmem>>, vector<16x1xi32>
    %2 = tpu.iota {dimensions = array<i32: 1>} : vector<16x7xi32>
    %3 = vector.broadcast %1 : vector<16x1xi32> to vector<16x7xi32>
    %4 = arith.cmpi eq, %2, %3 : vector<16x7xi32>
    %5 = arith.extui %4 : vector<16x7xi1> to vector<16x7xi32>
    %6 = arith.sitofp %5 : vector<16x7xi32> to vector<16x7xf32>
    %7 = arith.mulf %0, %6 : vector<16x7xf32>
    %cst = arith.constant dense<0.000000e+00> : vector<7xf32>
    %8 = vector.multi_reduction <add>, %7, %cst [0] : vector<16x7xf32> to vector<7xf32>
    %9 = vector.shape_cast %8 : vector<7xf32> to vector<1x7xf32>
    %10 = vector.shape_cast %9 : vector<1x7xf32> to vector<1x1x7xf32>
    %cst_3 = arith.constant dense<0.000000e+00> : vector<1xf32>
    %11 = vector.multi_reduction <add>, %10, %cst_3 [1, 2] : vector<1x1x7xf32> to vector<1xf32>
    %12 = vector.shape_cast %11 : vector<1xf32> to vector<1x1x1xf32>
    %13 = vector.extract %12[0, 0, 0] : f32 from vector<1x1x1xf32>
    %cst_4 = arith.constant 0.000000e+00 : f32
    %14 = arith.subf %cst_4, %13 : f32
    %c0_5 = arith.constant 0 : index
    %c0_6 = arith.constant 0 : index
    %15 = memref.load %arg3[%c0_5, %c0_6] : memref<1x1xf32, #tpu.memory_space<smem>>
    memref.store %14, %arg3[%c0_5, %c0_6] : memref<1x1xf32, #tpu.memory_space<smem>>
    return
  }
  func.func @transform_0(%arg0: i32) -> (i32, i32) {
    %c0_i32 = arith.constant 0 : i32
    %c0_i32_0 = arith.constant 0 : i32
    return %arg0, %c0_i32 : i32, i32
  }
  func.func @transform_1(%arg0: i32) -> (i32, i32) {
    %c0_i32 = arith.constant 0 : i32
    %c0_i32_0 = arith.constant 0 : i32
    return %arg0, %c0_i32 : i32, i32
  }
  func.func @transform_2(%arg0: i32) -> (i32, i32) {
    %c0_i32 = arith.constant 0 : i32
    %c0_i32_0 = arith.constant 0 : i32
    %c0_i32_1 = arith.constant 0 : i32
    return %c0_i32, %c0_i32_0 : i32, i32
  }
}

</mosaic_0001>

<llo_original>
// kernel: tpu_custom_call.1
$region0: #{tpu_custom_call.1}
  #allocation0 [shape = 'u32[]', space=smem, size = 0x4, offset = 0x4, fixed_abs, tag = 'smem constant byte address 0x4 - core index']
  #allocation1 [shape = 'u32[144,128]{1,0:T(1,128)}', space=vmem, size = 0x12000, scoped, tag = 'internal scratch']
  %s0 = inlined_call_operand.vmem [shape: f32[16,7], index: 0, kind: input, shape index: {}]
  %s1 = inlined_call_operand.vmem [shape: s32[16,1], index: 1, kind: input, shape index: {}]
  %s2 = inlined_call_operand.hbm [shape: f32[1,1], index: 2, kind: output, shape index: {}]
  %s3 = sld [smem:[#allocation0]]
  $region18: #{tpu_custom_call.1} parent=0
    _
  %s5 = ssub.s32 1, %s3
  %s6 = scalar_select 0, %s5, %s3
  $region1: #{tpu_custom_call.1} parent=0
    #allocation2 [shape = 'u8[512]{0}', space=smem, size = 0x200, scoped, tag = 'output window, operand 0, single buffered']
    #allocation3 [shape = 's32[1]{0}', space=sflag, size = 0x4, scoped, tag = 'scoped memory for tpu_custom_call.1']
    %7 = vsyncpa [#allocation3], 0
    // Predicated region
    $region2: #{tpu_custom_call.1} parent=1 // pred_check
      _
    $region3: #{tpu_custom_call.1} parent=1 // pred_check_branch
      %9 = sbr.rel (0) target = $region5
    $region4: #{tpu_custom_call.1} parent=1 // pred_region
      _
    $region5: #{tpu_custom_call.1} parent=1 // pred_fallthru
      _
    // Predicated region
    $region6: #{tpu_custom_call.1} parent=1 // pred_check
      _
    $region7: #{tpu_custom_call.1} parent=1 // pred_check_branch
      %11 = sbr.rel (0) target = $region9
    $region8: #{tpu_custom_call.1} parent=1 // pred_region
      _
    $region9: #{tpu_custom_call.1} parent=1 // pred_fallthru
      _
    %v12 = vld [vmem:[%s0] sm:$0xff]
    %v13 = vld [vmem:[%s0 + $0x8] sm:$0xff]
    %v14 = vld [vmem:[%s1] sm:$0xff]
    %v15 = vld [vmem:[%s1 + $0x8] sm:$0xff]
    %v16 = vlaneseq
    %v17 = vand.u32 %v16, 127
    %18 = vset.pattern.permute.xlu0 0
    %19 = vperm.xlu0 %18, %v14
    %v20 = vpop.permute.xlu0 %19
    %21 = vset.pattern.permute.xlu0 0
    %22 = vperm.xlu0 %21, %v15
    %v23 = vpop.permute.xlu0 %22
    %vm24 = vcmp.eq.s32.totalorder %v17, %v20
    %vm25 = vcmp.eq.s32.totalorder %v17, %v23
    %v26 = vsel %vm24, 1, 0
    %v27 = vsel %vm25, 1, 0
    %v28 = vcvt.s32.f32 %v26
    %v29 = vcvt.s32.f32 %v27
    %v30 = vmul.f32 %v12, %v28
    %v31 = vmul.f32 %v13, %v29
    %vm32 = vcmask 56320
    %v33 = vsel %vm32, %v30, 0.0
    %v34 = vsel %vm32, %v31, 0.0
    %v35 = vadd.f32 %v33, %v34
    %v36 = vrot.slane %v35, 4
    %v37 = vadd.f32 %v35, %v36
    %v38 = vrot.slane %v37, 2
    %v39 = vadd.f32 %v37, %v38
    %v40 = vrot.slane %v39, 1
    %v41 = vadd.f32 %v39, %v40
    %vm42 = vcmask 49152
    %v43 = vsel %vm42, %v41, 0.0
    %44 = vadd.xlane.f32.xlu0 %v43
    %v45 = vpop.xlane.xlu0 %44
    %v46 = vrot.slane %v45, 4
    %v47 = vadd.f32 %v45, %v46
    %v48 = vrot.slane %v47, 2
    %v49 = vadd.f32 %v47, %v48
    %v50 = vrot.slane %v49, 1
    %v51 = vadd.f32 %v49, %v50
    %s52 = vtos %v51
    %s53 = ssub.f32 0.0, %s52
    %s54 = scalar_lea.smem [#allocation2], 0
    %55 = sst [smem:[%s54]] %s53
    // Predicated region
    $region10: #{tpu_custom_call.1} parent=1 // pred_check
      _
    $region11: #{tpu_custom_call.1} parent=1 // pred_check_branch
      %57 = sbr.rel (0) target = $region13
    $region12: #{tpu_custom_call.1} parent=1 // pred_region
      %s59 = ssub.s32 16, 16
      %60 = vsyncadd [#allocation3], %s59
      %63 = dma.smem_to_hbm [#allocation2], 16, %s2, [#allocation3]
    $region13: #{tpu_custom_call.1} parent=1 // pred_fallthru
      _
    // Predicated region
    $region14: #{tpu_custom_call.1} parent=1 // pred_check
      _
    $region15: #{tpu_custom_call.1} parent=1 // pred_check_branch
      %65 = sbr.rel (0) target = $region17
    $region16: #{tpu_custom_call.1} parent=1 // pred_region
      %66 = dma.done [#allocation3], 16
    $region17: #{tpu_custom_call.1} parent=1 // pred_fallthru
      _
    %67 = sfence
    %68 = vsyncpa [#allocation3], 1

</llo_original>
